<compile_context>
chip_gen: v5e
topology: v5e:2x2
jax: 0.10.0
libtpu: 0.0.40
codegen_flags: <defaults>
</compile_context>

<pallas_src>
import functools

import jax
import jax.numpy as jnp
from jax import lax
from jax.experimental import pallas as pl
from jax.experimental.pallas import tpu as pltpu


def _soft_attention_kernel(*refs, has_mask, seq_len, block_l):
    if has_mask:
        x_ref, w_ref, mask_ref, out_ref, acc_ref, s_ref = refs
    else:
        x_ref, w_ref, out_ref, acc_ref, s_ref = refs
        mask_ref = None

    t = pl.program_id(1)
    last = pl.num_programs(1) - 1

    @pl.when(t == 0)
    def _init():
        acc_ref[...] = jnp.zeros_like(acc_ref)
        s_ref[...] = jnp.zeros_like(s_ref)

    x = x_ref[...]                                   # (TL, H), native dtype
    w = w_ref[...]                                   # (1, H)

    # e = w @ x^T -> (1, TL): lane-major scores (same q@k^T contraction pattern as flash attn).
    e = lax.dot_general(w, x, (((1,), (1,)), ((), ())),
                        precision=lax.Precision.HIGHEST,
                        preferred_element_type=jnp.float32)
    e = jnp.tanh(e)                                  # bounded in [-1, 1]
    p = jnp.exp(e)                                   # (1, TL) f32, <= e, never overflows

    if has_mask:
        # 0/1 int8 mask; p *= mask  ==  exp(score + (-inf)) == 0 for dropped positions.
        p = p * mask_ref[...].astype(p.dtype)

    def _accumulate(xv, pv):
        # softmax denominator (tiny lane reduce) + weighted sum on the MXU: (1,TL)@(TL,H)->(1,H).
        s_ref[...] += jnp.sum(pv, axis=1, keepdims=True)
        acc_ref[...] += lax.dot_general(pv.astype(xv.dtype), xv,
                                        (((1,), (0,)), ((), ())),
                                        precision=lax.Precision.HIGHEST,
                                        preferred_element_type=jnp.float32)

    if seq_len % block_l == 0:
        # Every tile is full: no masking work at all on the hot path.
        _accumulate(x, p)
    else:
        @pl.when(t < last)
        def _full_tile():
            _accumulate(x, p)

        @pl.when(t == last)
        def _tail_tile():
            # Only the last sequence tile reads past L; zero both p and x there so that
            # out-of-bounds garbage (possibly NaN/Inf) can never reach the accumulators.
            nv = seq_len % block_l                                   # python int > 0
            col = lax.broadcasted_iota(jnp.int32, (1, block_l), 1)
            row = lax.broadcasted_iota(jnp.int32, (block_l, 1), 0)
            _accumulate(jnp.where(row < nv, x, jnp.zeros_like(x)),
                        jnp.where(col < nv, p, jnp.zeros_like(p)))

    @pl.when(t == last)
    def _finalize():
        # Exact normalization (once per batch row -> free). A fully-masked row gives s == 0
        # -> NaN output, matching torch.softmax over an all -inf row.
        out_ref[...] = (acc_ref[...] / s_ref[...]).astype(out_ref.dtype)


def _vmem_capacity_bytes():
    try:
        return int(pltpu.get_tpu_info().vmem_capacity_bytes)
    except Exception:
        return 64 * 1024 * 1024      # conservative (v7x per-core) fallback


def _pick_block_l(L, H, itemsize, has_mask, vmem_cap):
    """Sequence tile: ~2 MiB per x tile (>=85% of HBM roofline), capped so the
    double-buffered x stream stays well under 1/3 of this generation's VMEM."""
    row_bytes = max(1, H * itemsize)
    cap_rows = max(8, (vmem_cap // 6) // row_bytes)           # one buffer <= VMEM/6
    target_rows = max(8, (2 * 1024 * 1024) // row_bytes)      # ~2 MiB tiles
    tl = int(min(cap_rows, target_rows))
    if L <= tl:
        return L                      # whole (padded) sequence in one tile, no ragged path
    # Multi-tile: keep the x block sublane-aligned; with a mask the (1, TL) mask block's
    # lane dim must be a multiple of 128 (or equal to L).
    quantum = 128 if has_mask else 8
    return max(quantum, (tl // quantum) * quantum)


def soft_attention(inputs, atten_weight, mask=None, *, block_l=None):
    """Pallas implementation of SoftAttention.forward. Returns (B, H)."""
    B, L, H = inputs.shape
    has_mask = mask is not None

    # (H, 1) -> (1, H). Kept in the input dtype so the matvec is single-dtype on the MXU
    # (exact for f32 inputs; for bf16 inputs this matches a bf16-parameter module).
    w_row = jnp.reshape(atten_weight, (1, H)).astype(inputs.dtype)

    vmem_cap = _vmem_capacity_bytes()
    itemsize = jnp.dtype(inputs.dtype).itemsize
    if block_l is None:
        tl = _pick_block_l(L, H, itemsize, has_mask, vmem_cap)
    else:
        tl = int(block_l)
        if tl != L and tl % 8 != 0:
            raise ValueError("block_l must be a multiple of 8 or equal to the sequence length")
        if has_mask and tl != L and tl % 128 != 0:
            raise ValueError("with a mask, block_l must be a multiple of 128 or equal to L")

    grid = (B, pl.cdiv(L, tl))

    in_specs = [
        pl.BlockSpec((None, tl, H), lambda b, t: (b, t, 0)),     # x tile (TL, H)
        pl.BlockSpec((1, H), lambda b, t: (0, 0)),               # weight row (broadcast)
    ]
    args = [inputs, w_row]

    if has_mask:
        # (B, L) -> (B, 1, L) 0/1 int8: lane-major (matches the (1, TL) scores), 1 byte/elem.
        mask_i8 = (jnp.asarray(mask) != 0).astype(jnp.int8).reshape(B, 1, L)
        in_specs.append(pl.BlockSpec((None, 1, tl), lambda b, t: (b, 0, t)))
        args.append(mask_i8)

    kernel = functools.partial(_soft_attention_kernel,
                               has_mask=has_mask, seq_len=L, block_l=tl)

    out = pl.pallas_call(
        kernel,
        out_shape=jax.ShapeDtypeStruct((B, 1, H), inputs.dtype),
        grid=grid,
        in_specs=in_specs,
        out_specs=pl.BlockSpec((None, 1, H), lambda b, t: (b, 0, 0)),
        scratch_shapes=[
            pltpu.VMEM((1, H), jnp.float32),   # weighted-sum numerator accumulator
            pltpu.VMEM((1, 1), jnp.float32),   # softmax denominator accumulator
        ],
        compiler_params=pltpu.CompilerParams(
            dimension_semantics=("parallel", "arbitrary"),
            # Tiles were sized to <= VMEM/6 per buffer, so half the physical VMEM is a safe,
            # generation-aware limit (32 MiB on v7x, 64 MiB on v5e/v6e) with ample headroom.
            vmem_limit_bytes=int(vmem_cap // 2),
        ),
    )(*args)
    return out.reshape(B, H)


def _reference(inputs, atten_weight, mask=None):
    eij = jnp.tanh(jnp.squeeze(inputs @ atten_weight, -1))           # (B, L)
    if mask is not None:
        eij = eij + jnp.where(mask, 0.0, -jnp.inf)
    a = jax.nn.softmax(eij, axis=1)[..., None]                       # (B, L, 1)
    return jnp.sum(inputs * a, axis=1)                               # (B, H)


if __name__ == "__main__":
    key = jax.random.PRNGKey(0)
    k_x, k_w, k_m, k_x2 = jax.random.split(key, 4)

    batch, seq, hidden = 2, 8, 32
    inputs = jax.random.normal(k_x, (batch, seq, hidden), dtype=jnp.float32)
    atten_weight = jax.random.uniform(k_w, (hidden, 1), dtype=jnp.float32)   # nn.init.uniform_

    TOL = 1e-3  # exact divide in finalize (no approx reciprocal); f32 accumulation throughout

    # --- no-mask path (kernel variant without a mask operand) ---
    out = jax.block_until_ready(soft_attention(inputs, atten_weight, mask=None))
    ref = _reference(inputs, atten_weight, mask=None)
    assert out.shape == (batch, hidden)
    assert jnp.allclose(out, ref, atol=TOL, rtol=TOL)

    # --- masked path (True = keep; every row keeps at least one position) ---
    mask = jax.random.bernoulli(k_m, p=0.6, shape=(batch, seq))
    mask = mask.at[:, 0].set(True)
    out_m = jax.block_until_ready(soft_attention(inputs, atten_weight, mask=mask))
    ref_m = _reference(inputs, atten_weight, mask=mask)
    assert jnp.allclose(out_m, ref_m, atol=TOL, rtol=TOL)

    # --- multi-tile + ragged-tail path (L not divisible by the tile) ---
    seq_long = 200
    inputs_long = jax.random.normal(k_x2, (batch, seq_long, hidden), dtype=jnp.float32)
    out_l = jax.block_until_ready(
        soft_attention(inputs_long, atten_weight, mask=None, block_l=64))
    ref_l = _reference(inputs_long, atten_weight, mask=None)
    assert out_l.shape == (batch, hidden)
    assert jnp.allclose(out_l, ref_l, atol=TOL, rtol=TOL)

    print("KERNEL_OK")
</pallas_src>

<mosaic_0001>
module attributes {stable_mosaic.version = 11 : i64} {
  func.func @_soft_attention_kernel(%arg0: i32, %arg1: i32, %arg2: memref<1x8x32xf32, #tpu.memory_space<vmem>>, %arg3: memref<1x32xf32, #tpu.memory_space<vmem>>, %arg4: memref<1x1x32xf32, #tpu.memory_space<vmem>>, %arg5: memref<1x32xf32, #tpu.memory_space<vmem>>, %arg6: memref<1x1xf32, #tpu.memory_space<vmem>>) attributes {dimension_semantics = [#tpu.dimension_semantics<parallel>, #tpu.dimension_semantics<arbitrary>], iteration_bounds = array<i64: 2, 1>, scalar_prefetch = 0 : i64, scratch_operands = 2 : i64, tpu.core_type = #tpu.core_type<tc>, window_params = [{transform_indices = @transform_0, window_bounds = array<i64: 1, 8, 32>}, {pipeline_mode = #tpu.pipeline_mode<synchronous>, transform_indices = @transform_1, window_bounds = array<i64: 1, 32>}, {transform_indices = @transform_2, window_bounds = array<i64: 1, 1, 32>}]} {
    %c0_i32 = arith.constant 0 : i32
    %0 = arith.cmpi eq, %arg1, %c0_i32 : i32
    %1 = arith.extui %0 : i1 to i32
    %c0_i32_0 = arith.constant 0 : i32
    %2 = arith.cmpi ne, %1, %c0_i32_0 : i32
    scf.if %2 {
      %cst_17 = arith.constant 0.000000e+00 : f32
      %21 = vector.broadcast %cst_17 : f32 to vector<1x32xf32>
      %c0_18 = arith.constant 0 : index
      %c0_19 = arith.constant 0 : index
      %22 = vector.load %arg5[%c0_18, %c0_19] : memref<1x32xf32, #tpu.memory_space<vmem>>, vector<1x32xf32>
      tpu.vector_store %arg5[%c0_18, %c0_19], %21 {strides = array<i32>} : memref<1x32xf32, #tpu.memory_space<vmem>>, vector<1x32xf32>,
      %cst_20 = arith.constant 0.000000e+00 : f32
      %23 = vector.broadcast %cst_20 : f32 to vector<1x1xf32>
      %c0_21 = arith.constant 0 : index
      %c0_22 = arith.constant 0 : index
      %24 = vector.load %arg6[%c0_21, %c0_22] : memref<1x1xf32, #tpu.memory_space<vmem>>, vector<1x1xf32>
      tpu.vector_store %arg6[%c0_21, %c0_22], %23 {strides = array<i32>} : memref<1x1xf32, #tpu.memory_space<vmem>>, vector<1x1xf32>,
    } else {
    }
    %c0 = arith.constant 0 : index
    %c0_1 = arith.constant 0 : index
    %c0_2 = arith.constant 0 : index
    %3 = vector.load %arg2[%c0, %c0_1, %c0_2] : memref<1x8x32xf32, #tpu.memory_space<vmem>>, vector<1x8x32xf32>
    %4 = vector.shape_cast %3 : vector<1x8x32xf32> to vector<8x32xf32>
    %c0_3 = arith.constant 0 : index
    %c0_4 = arith.constant 0 : index
    %5 = vector.load %arg3[%c0_3, %c0_4] : memref<1x32xf32, #tpu.memory_space<vmem>>, vector<1x32xf32>
    %cst = arith.constant dense<0.000000e+00> : vector<1x8xf32>
    %6 = tpu.matmul %5, %4, %cst {dimension_numbers = #tpu.dot_dimension_numbers<[1], [1], [0], [0], [0, 0, 1, 0], [], []>, precision = #tpu.contract_precision<fp32>} : vector<1x32xf32>, vector<8x32xf32>, vector<1x8xf32> -> vector<1x8xf32>
    %7 = math.tanh %6 : vector<1x8xf32>
    %8 = math.exp %7 : vector<1x8xf32>
    %c0_5 = arith.constant 0 : index
    %c0_6 = arith.constant 0 : index
    %9 = vector.load %arg6[%c0_5, %c0_6] : memref<1x1xf32, #tpu.memory_space<vmem>>, vector<1x1xf32>
    %cst_7 = arith.constant dense<0.000000e+00> : vector<1xf32>
    %10 = vector.multi_reduction <add>, %8, %cst_7 [1] : vector<1x8xf32> to vector<1xf32>
    %11 = vector.shape_cast %10 : vector<1xf32> to vector<1x1xf32>
    %12 = arith.addf %9, %11 : vector<1x1xf32>
    %c0_8 = arith.constant 0 : index
    %c0_9 = arith.constant 0 : index
    %13 = vector.load %arg6[%c0_8, %c0_9] : memref<1x1xf32, #tpu.memory_space<vmem>>, vector<1x1xf32>
    tpu.vector_store %arg6[%c0_8, %c0_9], %12 {strides = array<i32>} : memref<1x1xf32, #tpu.memory_space<vmem>>, vector<1x1xf32>,
    %c0_10 = arith.constant 0 : index
    %c0_11 = arith.constant 0 : index
    %14 = vector.load %arg5[%c0_10, %c0_11] : memref<1x32xf32, #tpu.memory_space<vmem>>, vector<1x32xf32>
    %cst_12 = arith.constant dense<0.000000e+00> : vector<1x32xf32>
    %15 = tpu.matmul %8, %4, %cst_12 {dimension_numbers = #tpu.dot_dimension_numbers<[1], [0], [0], [1], [0, 0, 1, 1], [], []>, precision = #tpu.contract_precision<fp32>} : vector<1x8xf32>, vector<8x32xf32>, vector<1x32xf32> -> vector<1x32xf32>
    %16 = arith.addf %14, %15 : vector<1x32xf32>
    %c0_13 = arith.constant 0 : index
    %c0_14 = arith.constant 0 : index
    %17 = vector.load %arg5[%c0_13, %c0_14] : memref<1x32xf32, #tpu.memory_space<vmem>>, vector<1x32xf32>
    tpu.vector_store %arg5[%c0_13, %c0_14], %16 {strides = array<i32>} : memref<1x32xf32, #tpu.memory_space<vmem>>, vector<1x32xf32>,
    %c0_i32_15 = arith.constant 0 : i32
    %18 = arith.cmpi eq, %arg1, %c0_i32_15 : i32
    %19 = arith.extui %18 : i1 to i32
    %c0_i32_16 = arith.constant 0 : i32
    %20 = arith.cmpi ne, %19, %c0_i32_16 : i32
    scf.if %20 {
      %c0_17 = arith.constant 0 : index
      %c0_18 = arith.constant 0 : index
      %21 = vector.load %arg5[%c0_17, %c0_18] : memref<1x32xf32, #tpu.memory_space<vmem>>, vector<1x32xf32>
      %c0_19 = arith.constant 0 : index
      %c0_20 = arith.constant 0 : index
      %22 = vector.load %arg6[%c0_19, %c0_20] : memref<1x1xf32, #tpu.memory_space<vmem>>, vector<1x1xf32>
      %23 = vector.broadcast %22 : vector<1x1xf32> to vector<1x32xf32>
      %24 = arith.divf %21, %23 : vector<1x32xf32>
      %c0_21 = arith.constant 0 : index
      %c0_22 = arith.constant 0 : index
      %c0_23 = arith.constant 0 : index
      %25 = vector.load %arg4[%c0_21, %c0_22, %c0_23] : memref<1x1x32xf32, #tpu.memory_space<vmem>>, vector<1x1x32xf32>
      %26 = vector.shape_cast %25 : vector<1x1x32xf32> to vector<1x32xf32>
      %27 = vector.shape_cast %24 : vector<1x32xf32> to vector<1x1x32xf32>
      tpu.vector_store %arg4[%c0_21, %c0_22, %c0_23], %27 {strides = array<i32>} : memref<1x1x32xf32, #tpu.memory_space<vmem>>, vector<1x1x32xf32>,
    } else {
    }
    return
  }
  func.func @transform_0(%arg0: i32, %arg1: i32) -> (i32, i32, i32) {
    %c0_i32 = arith.constant 0 : i32
    %c0_i32_0 = arith.constant 0 : i32
    return %arg0, %arg1, %c0_i32 : i32, i32, i32
  }
  func.func @transform_1(%arg0: i32, %arg1: i32) -> (i32, i32) {
    %c0_i32 = arith.constant 0 : i32
    %c0_i32_0 = arith.constant 0 : i32
    %c0_i32_1 = arith.constant 0 : i32
    return %c0_i32, %c0_i32_0 : i32, i32
  }
  func.func @transform_2(%arg0: i32, %arg1: i32) -> (i32, i32, i32) {
    %c0_i32 = arith.constant 0 : i32
    %c0_i32_0 = arith.constant 0 : i32
    %c0_i32_1 = arith.constant 0 : i32
    return %arg0, %c0_i32, %c0_i32_0 : i32, i32, i32
  }
}

</mosaic_0001>

<llo_original>
// kernel: tpu_custom_call.1
$region0: #{tpu_custom_call.1}
  #allocation0 [shape = 'u32[]', space=smem, size = 0x4, offset = 0x4, fixed_abs, tag = 'smem constant byte address 0x4 - core index']
  #allocation1 [shape = 'u32[72,128]{1,0:T(1,128)}', space=vmem, size = 0x9000, scoped, tag = 'internal scratch']
  #allocation2 [shape = 'f32[1,32]{1,0:T(1,128)}', space=vmem, size = 0x200, scoped, tag = 'scratch operand']
  #allocation3 [shape = 'f32[1,1]{1,0:T(1,128)}', space=vmem, size = 0x200, scoped, tag = 'scratch operand']
  %s0 = inlined_call_operand.hbm [shape: f32[2,8,32], index: 0, kind: input, shape index: {}]
  %s1 = inlined_call_operand.hbm [shape: f32[1,32], index: 1, kind: input, shape index: {}]
  %s2 = inlined_call_operand.hbm [shape: f32[2,1,32], index: 2, kind: output, shape index: {}]
  %s3 = sld [smem:[#allocation0]]
  $region57: #{tpu_custom_call.1} parent=0
    _
  %s5 = ssub.s32 1, %s3
  %s6 = scalar_select 0, %s5, %s3
  $region1: #{tpu_custom_call.1} parent=0
    #allocation4 [shape = 'u8[8192]{0}', space=vmem, size = 0x2000, scoped, tag = 'input window, operand 0']
    #allocation5 [shape = 's32[2]{0}', space=sflag, size = 0x8, scoped, tag = 'scoped memory for tpu_custom_call.1']
    #allocation6 [shape = 's32[2]{0}', space=sflag, size = 0x8, scoped, tag = 'scoped memory for tpu_custom_call.1']
    #allocation7 [shape = 'u8[512]{0}', space=vmem, size = 0x400, scoped, tag = 'input window, operand 1, single buffered']
    #allocation8 [shape = 's32[1]{0}', space=sflag, size = 0x4, scoped, tag = 'scoped memory for tpu_custom_call.1']
    #allocation9 [shape = 'u8[1024]{0}', space=vmem, size = 0x400, scoped, tag = 'output window, operand 0']
    %7 = vsyncpa [#allocation5], 0
    %s8 = scalar_lea.sflag [#allocation5], 1
    %9 = vsyncpa %s8, 0
    %10 = vsyncpa [#allocation8], 0
    %11 = vsyncpa [#allocation6], 0
    %s12 = scalar_lea.sflag [#allocation6], 1
    %13 = vsyncpa %s12, 0
    loop: start=0, step=1, limit=4
    $region2: #{tpu_custom_call.1} parent=1 // loop_pre_header
      _
    $region3: #{tpu_custom_call.1} parent=1 // loop_header
      %s15 = sphi 0, %s19
      %p16 = scmp.ge.s32.totalorder %s15, 4
      %s22 = sphi 0, %s34
      %s23 = sphi 0, %s30
      %s24 = sphi 0, %s22
      %s25 = sphi 0, %s23
      %s26 = sphi 0, %s24
      %s27 = sphi 0, %s25
      %s39 = sphi 0, %s41
      %s42 = sphi 0, %s39
      %s43 = sphi 0, %s42
      %s59 = sphi 0, %s43
      %s63 = sphi 0, %s63
      %s65 = sphi 0, %s63
      %s66 = sphi 0, %s65
      %s80 = sphi 0, %s66
      %s86 = sphi 0, %s88
      %s89 = sphi 0, %s86
      %s90 = sphi 0, %s89
      %s106 = sphi 0, %s90
    $region4: #{tpu_custom_call.1} parent=1 // loop_header_branch
      %18 = sbr.rel (%p16) target = $region8
    $region5: #{tpu_custom_call.1} parent=1 // loop_body
      %s20 = ssub.s32 %s15, 1
      %s21 = ssub.s32 %s15, 2
      %s28 = sadd.s32 1, %s23
      %p29 = scmp.ge.s32.totalorder %s28, 1
      %s30 = scalar_select %p29, 0, %s28
      %s31 = sadd.s32 1, %s22
      %s32 = scalar_select %p29, %s31, %s22
      %p33 = scmp.ge.s32.totalorder %s32, 2
      %s34 = scalar_select %p33, 0, %s32
      %s35 = ssub.s32 %s22, %s34
      %s36 = ssub.s32 %s23, %s30
      %s37 = sor.u32 %s35, %s36
      %p38 = scmp.eq.s32.totalorder %s37, 0
      %s40 = sadd.s32 %s39, 1
      %s41 = scalar_select %p38, %s39, %s40
      %p44 = pneg %p38
      %p45 = scmp.eq.s32.totalorder %s15, 1
      %p46 = por %p44, %p45
      %p47 = scmp.ne.s32.totalorder %s39, %s42
      %p48 = scmp.eq.s32.totalorder %s15, 0
      %p49 = por %p47, %p48
      %p50 = scmp.ne.s32.totalorder %s39, %s42
      %p51 = scmp.eq.s32.totalorder %s20, 1
      %p52 = por %p50, %p51
      %p53 = scmp.ne.s32.totalorder %s42, %s43
      %p54 = scmp.eq.s32.totalorder %s20, 0
      %p55 = por %p53, %p54
      %p56 = scmp.ne.s32.totalorder %s42, %s43
      %p57 = scmp.eq.s32.totalorder %s21, 1
      %p58 = por %p56, %p57
      %p60 = scmp.ne.s32.totalorder %s43, %s59
      %p61 = scmp.eq.s32.totalorder %s21, 0
      %p62 = por %p60, %p61
      %s64 = sadd.s32 %s63, 1
      %p67 = scmp.eq.s32.totalorder %s15, 1
      %p68 = scmp.ne.s32.totalorder %s63, %s65
      %p69 = scmp.eq.s32.totalorder %s15, 0
      %p70 = por %p68, %p69
      %p71 = scmp.ne.s32.totalorder %s63, %s65
      %p72 = scmp.eq.s32.totalorder %s20, 1
      %p73 = por %p71, %p72
      %p74 = scmp.ne.s32.totalorder %s65, %s66
      %p75 = scmp.eq.s32.totalorder %s20, 0
      %p76 = por %p74, %p75
      %p77 = scmp.ne.s32.totalorder %s65, %s66
      %p78 = scmp.eq.s32.totalorder %s21, 1
      %p79 = por %p77, %p78
      %p81 = scmp.ne.s32.totalorder %s66, %s80
      %p82 = scmp.eq.s32.totalorder %s21, 0
      %p83 = por %p81, %p82
      %s84 = ssub.s32 %s22, %s34
      %p85 = scmp.eq.s32.totalorder %s84, 0
      %s87 = sadd.s32 %s86, 1
      %s88 = scalar_select %p85, %s86, %s87
      %p91 = pneg %p85
      %p92 = scmp.eq.s32.totalorder %s15, 1
      %p93 = por %p91, %p92
      %p94 = scmp.ne.s32.totalorder %s86, %s89
      %p95 = scmp.eq.s32.totalorder %s15, 0
      %p96 = por %p94, %p95
      %p97 = scmp.ne.s32.totalorder %s86, %s89
      %p98 = scmp.eq.s32.totalorder %s20, 1
      %p99 = por %p97, %p98
      %p100 = scmp.ne.s32.totalorder %s89, %s90
      %p101 = scmp.eq.s32.totalorder %s20, 0
      %p102 = por %p100, %p101
      %p103 = scmp.ne.s32.totalorder %s89, %s90
      %p104 = scmp.eq.s32.totalorder %s21, 1
      %p105 = por %p103, %p104
      %p107 = scmp.ne.s32.totalorder %s90, %s106
      %p108 = scmp.eq.s32.totalorder %s21, 0
      %p109 = por %p107, %p108
      %p110 = scmp.le.s32.totalorder 1, %s15
      %p111 = scmp.lt.s32.totalorder %s15, 3
      %p112 = pnand %p110, %p111
      %p113 = pneg %p112
      // Predicated region
      $region9: #{tpu_custom_call.1} parent=5 // pred_check
        _
      $region10: #{tpu_custom_call.1} parent=5 // pred_check_branch
        %115 = sbr.rel (%p112) target = $region12
      $region11: #{tpu_custom_call.1} parent=5 // pred_region
        %s116 = ssub.s32 %s15, 1
        // Predicated region
        $region13: #{tpu_custom_call.1} parent=11 // pred_check
          %p117 = pneg %p76
        $region14: #{tpu_custom_call.1} parent=11 // pred_check_branch
          %119 = sbr.rel (%p117) target = $region16
        $region15: #{tpu_custom_call.1} parent=11 // pred_region
          %121 = vsyncadd [#allocation8], 0
          %s123 = sshll.u32 %s1, 4
          %s124 = int_to_ptr.hbm [resolvable:$true] %s123
          %s125 = sshll.u32 [#allocation7], 4
          %s126 = int_to_ptr.vmem [resolvable:$true] %s125
          %128 = dma.hbm_to_vmem [thread:$0]  %s124, 16, %s126, [#allocation8]
        $region16: #{tpu_custom_call.1} parent=11 // pred_fallthru
          _
      $region12: #{tpu_custom_call.1} parent=5 // pred_fallthru
        _
      %p129 = scmp.lt.s32.totalorder %s15, 2
      // Predicated region
      $region17: #{tpu_custom_call.1} parent=5 // pred_check
        %p130 = pneg %p129
      $region18: #{tpu_custom_call.1} parent=5 // pred_check_branch
        %132 = sbr.rel (%p130) target = $region20
      $region19: #{tpu_custom_call.1} parent=5 // pred_region
        // Predicated region
        $region21: #{tpu_custom_call.1} parent=19 // pred_check
          %p133 = pneg %p49
        $region22: #{tpu_custom_call.1} parent=19 // pred_check_branch
          %135 = sbr.rel (%p133) target = $region24
        $region23: #{tpu_custom_call.1} parent=19 // pred_region
          %s136 = sand.u32 %s39, 1
          %s137 = scalar_lea.sflag [#allocation5], %s136
          %s138 = sand.u32 %s39, 1
          %s139 = smul.addr %s138, 8
          %s140 = scalar_lea.vmem [#allocation4], %s139
          %142 = vsyncadd %s137, 0
          %s143 = sadd.s32 %s23, %s22
          %s144 = smul.addr %s143, 8
          %s145 = scalar_lea.hbm %s0, %s144
          %s147 = sshll.u32 %s145, 4
          %s148 = int_to_ptr.hbm [resolvable:$true] %s147
          %s149 = sshll.u32 %s140, 4
          %s150 = int_to_ptr.vmem [resolvable:$true] %s149
          %152 = dma.hbm_to_vmem [thread:$0]  %s148, 128, %s150, %s137
        $region24: #{tpu_custom_call.1} parent=19 // pred_fallthru
          _
      $region20: #{tpu_custom_call.1} parent=5 // pred_fallthru
        _
      %p153 = scmp.le.s32.totalorder 1, %s15
      %p154 = scmp.lt.s32.totalorder %s15, 3
      %p155 = pnand %p153, %p154
      %p156 = pneg %p155
      // Predicated region
      $region25: #{tpu_custom_call.1} parent=5 // pred_check
        _
      $region26: #{tpu_custom_call.1} parent=5 // pred_check_branch
        %158 = sbr.rel (%p155) target = $region28
      $region27: #{tpu_custom_call.1} parent=5 // pred_region
        %s159 = ssub.s32 %s15, 1
        %s160 = sand.u32 %s42, 1
        %s161 = scalar_lea.sflag [#allocation5], %s160
        %s162 = sand.u32 %s42, 1
        %s163 = smul.addr %s162, 8
        %s164 = scalar_lea.vmem [#allocation4], %s163
        // Predicated region
        $region29: #{tpu_custom_call.1} parent=27 // pred_check
          %p165 = pneg %p55
        $region30: #{tpu_custom_call.1} parent=27 // pred_check_branch
          %167 = sbr.rel (%p165) target = $region32
        $region31: #{tpu_custom_call.1} parent=27 // pred_region
          %169 = dma.done %s161, 128
        $region32: #{tpu_custom_call.1} parent=27 // pred_fallthru
          _
        // Predicated region
        $region33: #{tpu_custom_call.1} parent=27 // pred_check
          %p170 = pneg %p76
        $region34: #{tpu_custom_call.1} parent=27 // pred_check_branch
          %172 = sbr.rel (%p170) target = $region36
        $region35: #{tpu_custom_call.1} parent=27 // pred_region
          %174 = dma.done [#allocation8], 16
        $region36: #{tpu_custom_call.1} parent=27 // pred_fallthru
          _
        %s175 = sand.u32 %s42, 1
        %s176 = scalar_lea.sflag [#allocation5], %s175
        %s177 = sand.u32 %s42, 1
        %s178 = smul.addr %s177, 8
        %s179 = scalar_lea.vmem [#allocation4], %s178
        %p180 = pneg %p55
        %p181 = pneg %p52
        %p182 = pneg %p76
        %p183 = pneg %p73
        %p184 = pneg %p102
        %p185 = pneg %p99
        %s186 = sand.u32 %s89, 1
        %s187 = scalar_lea.sflag [#allocation6], %s186
        %s188 = sand.u32 %s89, 1
        %s189 = scalar_lea.vmem [#allocation9], %s188
        %p190 = scmp.eq.s32.totalorder %s25, 0
        // Predicated region
        $region37: #{tpu_custom_call.1} parent=27 // pred_check
          %p191 = pneg %p190
        $region38: #{tpu_custom_call.1} parent=27 // pred_check_branch
          %193 = sbr.rel (%p191) target = $region40
        $region39: #{tpu_custom_call.1} parent=27 // pred_region
          %vm194 = vcmask 253952
          %195 = vst.msk [vmem:[#allocation2] sm:$0x1] %vm194, 0.0
          %vm196 = vcmask 0
          %197 = vst.msk [vmem:[#allocation3] sm:$0x1] %vm196, 0.0
        $region40: #{tpu_custom_call.1} parent=27 // pred_fallthru
          _
        %v198 = vld [vmem:[%s164] sm:$0xff]
        %v199 = vld [vmem:[#allocation7] sm:$0x1]
        %vm200 = vcmask 261120
        %v202 = vsel %vm200, %v199, 0
        %v205 = vsel %vm200, %v198, 0
        %207 = vmatpush.xpose.msra.mxu0 0.0
        %208 = vmatpush.xpose.msra.mxu0 0.0
        %209 = vmatpush.xpose.msra.mxu0 0.0
        %210 = vmatpush.xpose.msra.mxu0 0.0
        %211 = vmatpush.xpose.msra.mxu0 0.0
        %212 = vmatpush.xpose.msra.mxu0 0.0
        %213 = vmatpush.xpose.msra.mxu0 0.0
        %214 = vmatpush.xpose.msra.mxu0 0.0
        %215 = vmatpush.xpose.msra.mxu0 0.0
        %216 = vmatpush.xpose.msra.mxu0 0.0
        %217 = vmatpush.xpose.msra.mxu0 0.0
        %218 = vmatpush.xpose.msra.mxu0 0.0
        %219 = vmatpush.xpose.msra.mxu0 0.0
        %220 = vmatpush.xpose.msra.mxu0 0.0
        %221 = vmatpush.xpose.msra.mxu0 0.0
        %v222 = vand.u32 %v205, 4294901760
        %223 = vmatpush.xpose.msra.mxu0 %v222
        %v224 = vand.u32 %v202, 4294901760
        %v225 = vsub.f32 %v202, %v224
        %v226 = vand.u32 %v225, 4294901760
        %v227 = vsub.f32 %v225, %v226
        %v228 = vand.u32 %v227, 4294901760
        %229 = vmatmul.f32.gmra.mxu0 %v228
        %v230 = vpop.f32.mrf.mxu0
        %v231 = vadd.f32 0.0, %v230
        %232 = vdwg.mxu0
        %233 = vmatpush.xpose.msra.mxu0 0.0
        %234 = vmatpush.xpose.msra.mxu0 0.0
        %235 = vmatpush.xpose.msra.mxu0 0.0
        %236 = vmatpush.xpose.msra.mxu0 0.0
        %237 = vmatpush.xpose.msra.mxu0 0.0
        %238 = vmatpush.xpose.msra.mxu0 0.0
        %239 = vmatpush.xpose.msra.mxu0 0.0
        %240 = vmatpush.xpose.msra.mxu0 0.0
        %241 = vmatpush.xpose.msra.mxu0 0.0
        %242 = vmatpush.xpose.msra.mxu0 0.0
        %243 = vmatpush.xpose.msra.mxu0 0.0
        %244 = vmatpush.xpose.msra.mxu0 0.0
        %245 = vmatpush.xpose.msra.mxu0 0.0
        %246 = vmatpush.xpose.msra.mxu0 0.0
        %247 = vmatpush.xpose.msra.mxu0 0.0
        %v248 = vand.u32 %v205, 4294901760
        %v249 = vsub.f32 %v205, %v248
        %v250 = vand.u32 %v249, 4294901760
        %v251 = vsub.f32 %v249, %v250
        %v252 = vand.u32 %v251, 4294901760
        %253 = vmatpush.xpose.msra.mxu0 %v252
        %v254 = vand.u32 %v202, 4294901760
        %255 = vmatmul.f32.gmra.mxu0 %v254
        %v256 = vpop.f32.mrf.mxu0
        %v257 = vadd.f32 %v231, %v256
        %258 = vdwg.mxu0
        %259 = vmatpush.xpose.msra.mxu0 0.0
        %260 = vmatpush.xpose.msra.mxu0 0.0
        %261 = vmatpush.xpose.msra.mxu0 0.0
        %262 = vmatpush.xpose.msra.mxu0 0.0
        %263 = vmatpush.xpose.msra.mxu0 0.0
        %264 = vmatpush.xpose.msra.mxu0 0.0
        %265 = vmatpush.xpose.msra.mxu0 0.0
        %266 = vmatpush.xpose.msra.mxu0 0.0
        %267 = vmatpush.xpose.msra.mxu0 0.0
        %268 = vmatpush.xpose.msra.mxu0 0.0
        %269 = vmatpush.xpose.msra.mxu0 0.0
        %270 = vmatpush.xpose.msra.mxu0 0.0
        %271 = vmatpush.xpose.msra.mxu0 0.0
        %272 = vmatpush.xpose.msra.mxu0 0.0
        %273 = vmatpush.xpose.msra.mxu0 0.0
        %v274 = vand.u32 %v205, 4294901760
        %v275 = vsub.f32 %v205, %v274
        %276 = vmatpush.xpose.msra.mxu0 %v275
        %v277 = vand.u32 %v202, 4294901760
        %v278 = vsub.f32 %v202, %v277
        %279 = vmatmul.f32.gmra.mxu0 %v278
        %v280 = vpop.f32.mrf.mxu0
        %v281 = vadd.f32 %v257, %v280
        %282 = vdwg.mxu0
        %283 = vmatpush.xpose.msra.mxu0 0.0
        %284 = vmatpush.xpose.msra.mxu0 0.0
        %285 = vmatpush.xpose.msra.mxu0 0.0
        %286 = vmatpush.xpose.msra.mxu0 0.0
        %287 = vmatpush.xpose.msra.mxu0 0.0
        %288 = vmatpush.xpose.msra.mxu0 0.0
        %289 = vmatpush.xpose.msra.mxu0 0.0
        %290 = vmatpush.xpose.msra.mxu0 0.0
        %291 = vmatpush.xpose.msra.mxu0 0.0
        %292 = vmatpush.xpose.msra.mxu0 0.0
        %293 = vmatpush.xpose.msra.mxu0 0.0
        %294 = vmatpush.xpose.msra.mxu0 0.0
        %295 = vmatpush.xpose.msra.mxu0 0.0
        %296 = vmatpush.xpose.msra.mxu0 0.0
        %297 = vmatpush.xpose.msra.mxu0 0.0
        %v298 = vand.u32 %v205, 4294901760
        %299 = vmatpush.xpose.msra.mxu0 %v298
        %v300 = vand.u32 %v202, 4294901760
        %v301 = vsub.f32 %v202, %v300
        %v302 = vand.u32 %v301, 4294901760
        %303 = vmatmul.f32.gmra.mxu0 %v302
        %v304 = vpop.f32.mrf.mxu0
        %v305 = vadd.f32 %v281, %v304
        %306 = vdwg.mxu0
        %307 = vmatpush.xpose.msra.mxu0 0.0
        %308 = vmatpush.xpose.msra.mxu0 0.0
        %309 = vmatpush.xpose.msra.mxu0 0.0
        %310 = vmatpush.xpose.msra.mxu0 0.0
        %311 = vmatpush.xpose.msra.mxu0 0.0
        %312 = vmatpush.xpose.msra.mxu0 0.0
        %313 = vmatpush.xpose.msra.mxu0 0.0
        %314 = vmatpush.xpose.msra.mxu0 0.0
        %315 = vmatpush.xpose.msra.mxu0 0.0
        %316 = vmatpush.xpose.msra.mxu0 0.0
        %317 = vmatpush.xpose.msra.mxu0 0.0
        %318 = vmatpush.xpose.msra.mxu0 0.0
        %319 = vmatpush.xpose.msra.mxu0 0.0
        %320 = vmatpush.xpose.msra.mxu0 0.0
        %321 = vmatpush.xpose.msra.mxu0 0.0
        %v322 = vand.u32 %v205, 4294901760
        %v323 = vsub.f32 %v205, %v322
        %v324 = vand.u32 %v323, 4294901760
        %325 = vmatpush.xpose.msra.mxu0 %v324
        %v326 = vand.u32 %v202, 4294901760
        %327 = vmatmul.f32.gmra.mxu0 %v326
        %v328 = vpop.f32.mrf.mxu0
        %v329 = vadd.f32 %v305, %v328
        %330 = vdwg.mxu0
        %331 = vmatpush.xpose.msra.mxu0 0.0
        %332 = vmatpush.xpose.msra.mxu0 0.0
        %333 = vmatpush.xpose.msra.mxu0 0.0
        %334 = vmatpush.xpose.msra.mxu0 0.0
        %335 = vmatpush.xpose.msra.mxu0 0.0
        %336 = vmatpush.xpose.msra.mxu0 0.0
        %337 = vmatpush.xpose.msra.mxu0 0.0
        %338 = vmatpush.xpose.msra.mxu0 0.0
        %339 = vmatpush.xpose.msra.mxu0 0.0
        %340 = vmatpush.xpose.msra.mxu0 0.0
        %341 = vmatpush.xpose.msra.mxu0 0.0
        %342 = vmatpush.xpose.msra.mxu0 0.0
        %343 = vmatpush.xpose.msra.mxu0 0.0
        %344 = vmatpush.xpose.msra.mxu0 0.0
        %345 = vmatpush.xpose.msra.mxu0 0.0
        %v346 = vand.u32 %v205, 4294901760
        %347 = vmatpush.xpose.msra.mxu0 %v346
        %v348 = vand.u32 %v202, 4294901760
        %349 = vmatmul.f32.gmra.mxu0 %v348
        %v350 = vpop.f32.mrf.mxu0
        %v351 = vadd.f32 %v329, %v350
        %352 = vdwg.mxu0
        %v353 = vtanh.pop %v351
        %v354 = vmul.f32 %v353, 1.442695
        %v355 = vpow.pop %v354
        %v356 = vld [vmem:[#allocation3] sm:$0x1]
        %vm357 = vcmask 57344
        %v358 = vsel %vm357, %v355, 0.0
        %359 = vadd.xlane.f32.xlu0 %v358
        %v360 = vpop.xlane.xlu0 %359
        %v361 = vadd.f32 %v356, %v360
        %vm362 = vcmask 0
        %363 = vst.msk [vmem:[#allocation3] sm:$0x1] %vm362, %v361
        %v364 = vld [vmem:[#allocation2] sm:$0x1]
        %vm365 = vcmask 64512
        %v367 = vsel %vm365, %v355, 0
        %369 = vmatpush.msra.mxu0 0.0
        %370 = vmatpush.msra.mxu0 0.0
        %371 = vmatpush.msra.mxu0 0.0
        %372 = vmatpush.msra.mxu0 0.0
        %373 = vmatpush.msra.mxu0 0.0
        %374 = vmatpush.msra.mxu0 0.0
        %375 = vmatpush.msra.mxu0 0.0
        %376 = vmatpush.msra.mxu0 0.0
        %377 = vmatpush.msra.mxu0 0.0
        %378 = vmatpush.msra.mxu0 0.0
        %379 = vmatpush.msra.mxu0 0.0
        %380 = vmatpush.msra.mxu0 0.0
        %381 = vmatpush.msra.mxu0 0.0
        %382 = vmatpush.msra.mxu0 0.0
        %383 = vmatpush.msra.mxu0 0.0
        %v384 = vand.u32 %v198, 4294901760
        %385 = vmatpush.msra.mxu0 %v384
        %v386 = vand.u32 %v367, 4294901760
        %v387 = vsub.f32 %v367, %v386
        %v388 = vand.u32 %v387, 4294901760
        %v389 = vsub.f32 %v387, %v388
        %v390 = vand.u32 %v389, 4294901760
        %391 = vmatmul.f32.gmra.mxu0 %v390
        %v392 = vpop.f32.mrf.mxu0
        %v393 = vadd.f32 0.0, %v392
        %394 = vdwg.mxu0
        %395 = vmatpush.msra.mxu0 0.0
        %396 = vmatpush.msra.mxu0 0.0
        %397 = vmatpush.msra.mxu0 0.0
        %398 = vmatpush.msra.mxu0 0.0
        %399 = vmatpush.msra.mxu0 0.0
        %400 = vmatpush.msra.mxu0 0.0
        %401 = vmatpush.msra.mxu0 0.0
        %402 = vmatpush.msra.mxu0 0.0
        %403 = vmatpush.msra.mxu0 0.0
        %404 = vmatpush.msra.mxu0 0.0
        %405 = vmatpush.msra.mxu0 0.0
        %406 = vmatpush.msra.mxu0 0.0
        %407 = vmatpush.msra.mxu0 0.0
        %408 = vmatpush.msra.mxu0 0.0
        %409 = vmatpush.msra.mxu0 0.0
        %v410 = vand.u32 %v198, 4294901760
        %v411 = vsub.f32 %v198, %v410
        %v412 = vand.u32 %v411, 4294901760
        %v413 = vsub.f32 %v411, %v412
        %v414 = vand.u32 %v413, 4294901760
        %415 = vmatpush.msra.mxu0 %v414
        %v416 = vand.u32 %v367, 4294901760
        %417 = vmatmul.f32.gmra.mxu0 %v416
        %v418 = vpop.f32.mrf.mxu0
        %v419 = vadd.f32 %v393, %v418
        %420 = vdwg.mxu0
        %421 = vmatpush.msra.mxu0 0.0
        %422 = vmatpush.msra.mxu0 0.0
        %423 = vmatpush.msra.mxu0 0.0
        %424 = vmatpush.msra.mxu0 0.0
        %425 = vmatpush.msra.mxu0 0.0
        %426 = vmatpush.msra.mxu0 0.0
        %427 = vmatpush.msra.mxu0 0.0
        %428 = vmatpush.msra.mxu0 0.0
        %429 = vmatpush.msra.mxu0 0.0
        %430 = vmatpush.msra.mxu0 0.0
        %431 = vmatpush.msra.mxu0 0.0
        %432 = vmatpush.msra.mxu0 0.0
        %433 = vmatpush.msra.mxu0 0.0
        %434 = vmatpush.msra.mxu0 0.0
        %435 = vmatpush.msra.mxu0 0.0
        %v436 = vand.u32 %v198, 4294901760
        %v437 = vsub.f32 %v198, %v436
        %438 = vmatpush.msra.mxu0 %v437
        %v439 = vand.u32 %v367, 4294901760
        %v440 = vsub.f32 %v367, %v439
        %441 = vmatmul.f32.gmra.mxu0 %v440
        %v442 = vpop.f32.mrf.mxu0
        %v443 = vadd.f32 %v419, %v442
        %444 = vdwg.mxu0
        %445 = vmatpush.msra.mxu0 0.0
        %446 = vmatpush.msra.mxu0 0.0
        %447 = vmatpush.msra.mxu0 0.0
        %448 = vmatpush.msra.mxu0 0.0
        %449 = vmatpush.msra.mxu0 0.0
        %450 = vmatpush.msra.mxu0 0.0
        %451 = vmatpush.msra.mxu0 0.0
        %452 = vmatpush.msra.mxu0 0.0
        %453 = vmatpush.msra.mxu0 0.0
        %454 = vmatpush.msra.mxu0 0.0
        %455 = vmatpush.msra.mxu0 0.0
        %456 = vmatpush.msra.mxu0 0.0
        %457 = vmatpush.msra.mxu0 0.0
        %458 = vmatpush.msra.mxu0 0.0
        %459 = vmatpush.msra.mxu0 0.0
        %v460 = vand.u32 %v198, 4294901760
        %461 = vmatpush.msra.mxu0 %v460
        %v462 = vand.u32 %v367, 4294901760
        %v463 = vsub.f32 %v367, %v462
        %v464 = vand.u32 %v463, 4294901760
        %465 = vmatmul.f32.gmra.mxu0 %v464
        %v466 = vpop.f32.mrf.mxu0
        %v467 = vadd.f32 %v443, %v466
        %468 = vdwg.mxu0
        %469 = vmatpush.msra.mxu0 0.0
        %470 = vmatpush.msra.mxu0 0.0
        %471 = vmatpush.msra.mxu0 0.0
        %472 = vmatpush.msra.mxu0 0.0
        %473 = vmatpush.msra.mxu0 0.0
        %474 = vmatpush.msra.mxu0 0.0
        %475 = vmatpush.msra.mxu0 0.0
        %476 = vmatpush.msra.mxu0 0.0
        %477 = vmatpush.msra.mxu0 0.0
        %478 = vmatpush.msra.mxu0 0.0
        %479 = vmatpush.msra.mxu0 0.0
        %480 = vmatpush.msra.mxu0 0.0
        %481 = vmatpush.msra.mxu0 0.0
        %482 = vmatpush.msra.mxu0 0.0
        %483 = vmatpush.msra.mxu0 0.0
        %v484 = vand.u32 %v198, 4294901760
        %v485 = vsub.f32 %v198, %v484
        %v486 = vand.u32 %v485, 4294901760
        %487 = vmatpush.msra.mxu0 %v486
        %v488 = vand.u32 %v367, 4294901760
        %489 = vmatmul.f32.gmra.mxu0 %v488
        %v490 = vpop.f32.mrf.mxu0
        %v491 = vadd.f32 %v467, %v490
        %492 = vdwg.mxu0
        %493 = vmatpush.msra.mxu0 0.0
        %494 = vmatpush.msra.mxu0 0.0
        %495 = vmatpush.msra.mxu0 0.0
        %496 = vmatpush.msra.mxu0 0.0
        %497 = vmatpush.msra.mxu0 0.0
        %498 = vmatpush.msra.mxu0 0.0
        %499 = vmatpush.msra.mxu0 0.0
        %500 = vmatpush.msra.mxu0 0.0
        %501 = vmatpush.msra.mxu0 0.0
        %502 = vmatpush.msra.mxu0 0.0
        %503 = vmatpush.msra.mxu0 0.0
        %504 = vmatpush.msra.mxu0 0.0
        %505 = vmatpush.msra.mxu0 0.0
        %506 = vmatpush.msra.mxu0 0.0
        %507 = vmatpush.msra.mxu0 0.0
        %v508 = vand.u32 %v198, 4294901760
        %509 = vmatpush.msra.mxu0 %v508
        %v510 = vand.u32 %v367, 4294901760
        %511 = vmatmul.f32.gmra.mxu0 %v510
        %v512 = vpop.f32.mrf.mxu0
        %v513 = vadd.f32 %v491, %v512
        %514 = vdwg.mxu0
        %v515 = vadd.f32 %v364, %v513
        %vm516 = vcmask 253952
        %517 = vst.msk [vmem:[#allocation2] sm:$0x1] %vm516, %v515
        // Predicated region
        $region41: #{tpu_custom_call.1} parent=27 // pred_check
          %p518 = pneg %p190
        $region42: #{tpu_custom_call.1} parent=27 // pred_check_branch
          %520 = sbr.rel (%p518) target = $region44
        $region43: #{tpu_custom_call.1} parent=27 // pred_region
          %v521 = vld [vmem:[#allocation2] sm:$0x1]
          %v522 = vld [vmem:[#allocation3] sm:$0x1]
          %524 = vset.pattern.permute.xlu0 0
          %525 = vperm.xlu0 %524, %v522
          %v526 = vpop.permute.xlu0 %525
          %v528 = vperm.slane %v526, 0
          %v529 = vrcp.pop %v528
          %v530 = vmul.f32 %v528, %v529
          %v531 = vsub.f32 1.0, %v530
          %v532 = vmul.f32 %v529, %v531
          %v533 = vadd.f32 %v529, %v532
          %vm534 = vweird.f32 %v528
          %vm535 = vweird.f32 %v529
          %vm536 = vmor %vm534, %vm535
          %v537 = vsel %vm536, %v529, %v533
          %v538 = vand.u32 2147483647, %v528
          %vm539 = vcmp.eq.f32.partialorder %v538, 8.507059e+37
          %v540 = vand.u32 %v528, 2147483648
          %v541 = vor.u32 1.1754944e-38, %v540
          %v542 = vsel %vm539, %v541, %v537
          %v543 = vmul.f32 %v521, %v542
          %544 = vst.msk [vmem:[%s189] sm:$0x1] %vm516, %v543
        $region44: #{tpu_custom_call.1} parent=27 // pred_fallthru
          _
        %s545 = sand.u32 %s89, 1
        %s546 = scalar_lea.sflag [#allocation6], %s545
        %s547 = sand.u32 %s89, 1
        %s548 = scalar_lea.vmem [#allocation9], %s547
        // Predicated region
        $region45: #{tpu_custom_call.1} parent=27 // pred_check
          %p549 = pneg %p99
        $region46: #{tpu_custom_call.1} parent=27 // pred_check_branch
          %551 = sbr.rel (%p549) target = $region48
        $region47: #{tpu_custom_call.1} parent=27 // pred_region
          %553 = vsyncadd %s546, 0
          %s554 = scalar_lea.hbm %s2, %s24
          %s556 = sshll.u32 %s548, 4
          %s557 = int_to_ptr.vmem [resolvable:$true] %s556
          %s558 = sshll.u32 %s554, 4
          %s559 = int_to_ptr.hbm [resolvable:$true] %s558
          %561 = dma.vmem_to_hbm [thread:$0]  %s557, 16, %s559, %s546
        $region48: #{tpu_custom_call.1} parent=27 // pred_fallthru
          _
      $region28: #{tpu_custom_call.1} parent=5 // pred_fallthru
        _
      %p562 = scmp.le.s32.totalorder 2, %s15
      // Predicated region
      $region49: #{tpu_custom_call.1} parent=5 // pred_check
        %p563 = pneg %p562
      $region50: #{tpu_custom_call.1} parent=5 // pred_check_branch
        %565 = sbr.rel (%p563) target = $region52
      $region51: #{tpu_custom_call.1} parent=5 // pred_region
        %s566 = ssub.s32 %s15, 2
        // Predicated region
        $region53: #{tpu_custom_call.1} parent=51 // pred_check
          %p567 = pneg %p105
        $region54: #{tpu_custom_call.1} parent=51 // pred_check_branch
          %569 = sbr.rel (%p567) target = $region56
        $region55: #{tpu_custom_call.1} parent=51 // pred_region
          %s570 = sand.u32 %s90, 1
          %s571 = scalar_lea.sflag [#allocation6], %s570
          %s572 = sand.u32 %s90, 1
          %s573 = scalar_lea.vmem [#allocation9], %s572
          %575 = dma.done %s571, 16
        $region56: #{tpu_custom_call.1} parent=51 // pred_fallthru
          _
      $region52: #{tpu_custom_call.1} parent=5 // pred_fallthru
        _
    $region6: #{tpu_custom_call.1} parent=1 // loop_footer
      %s19 = sadd.s32 1, %s15
    $region7: #{tpu_custom_call.1} parent=1 // loop_footer_branch
      %14 = sbr.rel target = $region3
    $region8: #{tpu_custom_call.1} parent=1 // loop_exit
      _
    %576 = vsyncpa [#allocation5], 1
    %s577 = scalar_lea.sflag [#allocation5], 1
    %578 = vsyncpa %s577, 1
    %579 = vsyncpa [#allocation8], 1
    %580 = vsyncpa [#allocation6], 1
    %s581 = scalar_lea.sflag [#allocation6], 1
    %582 = vsyncpa %s581, 1

</llo_original>
